<compile_context>
chip_gen: v7x
topology: tpu7x:2x2x1
jax: 0.10.0
libtpu: 0.0.40
codegen_flags: <defaults>
</compile_context>

<pallas_src>
import functools

import jax
import jax.numpy as jnp
from jax.experimental import pallas as pl
from jax.experimental.pallas import tpu as pltpu


def _round_up(x: int, m: int) -> int:
    return ((x + m - 1) // m) * m


def _bmm_kernel(a_ref, b_ref, o_ref, acc_ref):
    # a_ref: (tm, tk), b_ref: (tk, tn), o_ref: (tm, tn)  (batch dim squeezed)
    # acc_ref: f32 VMEM accumulator, resident across the K grid axis.
    @pl.when(pl.program_id(3) == 0)
    def _init():
        acc_ref[...] = jnp.zeros_like(acc_ref)

    acc_ref[...] += jnp.dot(
        a_ref[...], b_ref[...], preferred_element_type=jnp.float32
    )

    @pl.when(pl.program_id(3) == pl.num_programs(3) - 1)
    def _finalize():
        o_ref[...] = acc_ref[...].astype(o_ref.dtype)


@functools.partial(jax.jit, static_argnames=())
def attention_dot(vec1: jax.Array, vec2: jax.Array) -> jax.Array:
    """Batched matmul matching torch.bmm(vec1, vec2)."""
    B, M, K = vec1.shape
    B2, K2, N = vec2.shape
    assert B == B2 and K == K2, "shape mismatch for bmm"

    out_dtype = jnp.result_type(vec1.dtype, vec2.dtype)

    # ---- tile sizes ------------------------------------------------------
    # Sublane axis (M) -> multiple of 8; lane axes (K of A, N of out/B) ->
    # multiple of 128 (lane-dense stores, full MXU pushes).  Capped so that
    # double-buffered operands + f32 accumulator fit v7x's 64 MiB VMEM with
    # lots of headroom; 256-aligned where possible for v6e/v7x MXU.
    tm = min(256, _round_up(M, 8))
    tn = min(256, _round_up(N, 128))
    tk = min(512, _round_up(K, 128))

    Mp = _round_up(M, tm)
    Np = _round_up(N, tn)
    Kp = _round_up(K, tk)

    # Zero-pad to tile-aligned shapes (zero K-padding adds zero contributions;
    # padded M/N rows/cols are sliced off at the end).
    a = vec1
    b = vec2
    if (Mp, Kp) != (M, K):
        a = jnp.pad(a, ((0, 0), (0, Mp - M), (0, Kp - K)))
    if (Kp, Np) != (K, N):
        b = jnp.pad(b, ((0, 0), (0, Kp - K), (0, Np - N)))

    grid = (B, Mp // tm, Np // tn, Kp // tk)

    # ---- VMEM budget / cost estimate ------------------------------------
    in_bytes = max(jnp.dtype(vec1.dtype).itemsize, jnp.dtype(vec2.dtype).itemsize)
    out_bytes = jnp.dtype(out_dtype).itemsize
    vmem_needed = (
        2 * (tm * tk + tk * tn) * in_bytes   # double-buffered inputs
        + 2 * tm * tn * out_bytes            # double-buffered output
        + tm * tn * 4                        # f32 accumulator scratch
    )
    # Generous headroom, but stay well under v7x's 64 MiB physical VMEM.
    vmem_limit = int(min(max(4 * vmem_needed, 32 * 1024 * 1024), 48 * 1024 * 1024))

    cost = pl.CostEstimate(
        flops=2 * B * Mp * Np * Kp,
        transcendentals=0,
        bytes_accessed=(
            B * Mp * Kp * jnp.dtype(vec1.dtype).itemsize
            + B * Kp * Np * jnp.dtype(vec2.dtype).itemsize
            + B * Mp * Np * out_bytes
        ),
    )

    out_padded = pl.pallas_call(
        _bmm_kernel,
        out_shape=jax.ShapeDtypeStruct((B, Mp, Np), out_dtype),
        grid_spec=pltpu.PrefetchScalarGridSpec(
            num_scalar_prefetch=0,
            grid=grid,
            in_specs=[
                pl.BlockSpec(
                    (pl.Squeezed(), tm, tk), lambda bb, i, j, k: (bb, i, k)
                ),
                pl.BlockSpec(
                    (pl.Squeezed(), tk, tn), lambda bb, i, j, k: (bb, k, j)
                ),
            ],
            # Same (b, i, j) block across k -> accumulator stays resident.
            out_specs=pl.BlockSpec(
                (pl.Squeezed(), tm, tn), lambda bb, i, j, k: (bb, i, j)
            ),
            scratch_shapes=[pltpu.VMEM((tm, tn), jnp.float32)],
        ),
        compiler_params=pltpu.CompilerParams(
            dimension_semantics=("parallel", "parallel", "parallel", "arbitrary"),
            vmem_limit_bytes=vmem_limit,
        ),
        cost_estimate=cost,
    )(a, b)

    if (Mp, Np) != (M, N):
        out_padded = out_padded[:, :M, :N]
    return out_padded


if __name__ == "__main__":
    key = jax.random.PRNGKey(0)
    k1, k2 = jax.random.split(key)

    # Small shapes consistent with a bmm-style attention score computation:
    # vec1: (batch=2, seq=8, hidden=32), vec2: (batch=2, hidden=32, seq'=16)
    B, M, K, N = 2, 8, 32, 16
    vec1 = jax.random.normal(k1, (B, M, K), dtype=jnp.float32)
    vec2 = jax.random.normal(k2, (B, K, N), dtype=jnp.float32)

    out = attention_dot(vec1, vec2)
    out = jax.block_until_ready(out)

    # Correctness check against plain-JAX reference (== torch.bmm semantics).
    ref = jnp.einsum("bmk,bkn->bmn", vec1, vec2)
    assert out.shape == (B, M, N)
    assert jnp.allclose(out, ref, atol=1e-5, rtol=1e-5), "mismatch vs reference"

    print("KERNEL_OK")
</pallas_src>

<mosaic_0001>
module attributes {stable_mosaic.version = 11 : i64} {
  func.func @_bmm_kernel(%arg0: i32, %arg1: i32, %arg2: i32, %arg3: i32, %arg4: memref<1x8x128xf32, #tpu.memory_space<vmem>>, %arg5: memref<1x128x128xf32, #tpu.memory_space<vmem>>, %arg6: memref<1x8x128xf32, #tpu.memory_space<vmem>>, %arg7: memref<8x128xf32, #tpu.memory_space<vmem>>) attributes {dimension_semantics = [#tpu.dimension_semantics<parallel>, #tpu.dimension_semantics<parallel>, #tpu.dimension_semantics<parallel>, #tpu.dimension_semantics<arbitrary>], iteration_bounds = array<i64: 2, 1, 1, 1>, scalar_prefetch = 0 : i64, scratch_operands = 1 : i64, tpu.core_type = #tpu.core_type<tc>, window_params = [{transform_indices = @transform_0, window_bounds = array<i64: 1, 8, 128>}, {transform_indices = @transform_1, window_bounds = array<i64: 1, 128, 128>}, {transform_indices = @transform_2, window_bounds = array<i64: 1, 8, 128>}]} {
    %c0_i32 = arith.constant 0 : i32
    %0 = arith.cmpi eq, %arg3, %c0_i32 : i32
    %1 = arith.extui %0 : i1 to i32
    %c0_i32_0 = arith.constant 0 : i32
    %2 = arith.cmpi ne, %1, %c0_i32_0 : i32
    scf.if %2 {
      %cst_12 = arith.constant 0.000000e+00 : f32
      %14 = vector.broadcast %cst_12 : f32 to vector<8x128xf32>
      %c0_13 = arith.constant 0 : index
      %c0_14 = arith.constant 0 : index
      %15 = vector.load %arg7[%c0_13, %c0_14] : memref<8x128xf32, #tpu.memory_space<vmem>>, vector<8x128xf32>
      tpu.vector_store %arg7[%c0_13, %c0_14], %14 {strides = array<i32>} : memref<8x128xf32, #tpu.memory_space<vmem>>, vector<8x128xf32>,
    } else {
    }
    %c0 = arith.constant 0 : index
    %c0_1 = arith.constant 0 : index
    %3 = vector.load %arg7[%c0, %c0_1] : memref<8x128xf32, #tpu.memory_space<vmem>>, vector<8x128xf32>
    %c0_2 = arith.constant 0 : index
    %c0_3 = arith.constant 0 : index
    %c0_4 = arith.constant 0 : index
    %4 = vector.load %arg4[%c0_2, %c0_3, %c0_4] : memref<1x8x128xf32, #tpu.memory_space<vmem>>, vector<1x8x128xf32>
    %5 = vector.shape_cast %4 : vector<1x8x128xf32> to vector<8x128xf32>
    %c0_5 = arith.constant 0 : index
    %c0_6 = arith.constant 0 : index
    %c0_7 = arith.constant 0 : index
    %6 = vector.load %arg5[%c0_5, %c0_6, %c0_7] : memref<1x128x128xf32, #tpu.memory_space<vmem>>, vector<1x128x128xf32>
    %7 = vector.shape_cast %6 : vector<1x128x128xf32> to vector<128x128xf32>
    %cst = arith.constant dense<0.000000e+00> : vector<8x128xf32>
    %8 = tpu.matmul %5, %7, %cst {dimension_numbers = #tpu.dot_dimension_numbers<[1], [0], [0], [1], [0, 0, 1, 1], [], []>} : vector<8x128xf32>, vector<128x128xf32>, vector<8x128xf32> -> vector<8x128xf32>
    %9 = arith.addf %3, %8 : vector<8x128xf32>
    %c0_8 = arith.constant 0 : index
    %c0_9 = arith.constant 0 : index
    %10 = vector.load %arg7[%c0_8, %c0_9] : memref<8x128xf32, #tpu.memory_space<vmem>>, vector<8x128xf32>
    tpu.vector_store %arg7[%c0_8, %c0_9], %9 {strides = array<i32>} : memref<8x128xf32, #tpu.memory_space<vmem>>, vector<8x128xf32>,
    %c0_i32_10 = arith.constant 0 : i32
    %11 = arith.cmpi eq, %arg3, %c0_i32_10 : i32
    %12 = arith.extui %11 : i1 to i32
    %c0_i32_11 = arith.constant 0 : i32
    %13 = arith.cmpi ne, %12, %c0_i32_11 : i32
    scf.if %13 {
      %c0_12 = arith.constant 0 : index
      %c0_13 = arith.constant 0 : index
      %14 = vector.load %arg7[%c0_12, %c0_13] : memref<8x128xf32, #tpu.memory_space<vmem>>, vector<8x128xf32>
      %c0_14 = arith.constant 0 : index
      %c0_15 = arith.constant 0 : index
      %c0_16 = arith.constant 0 : index
      %15 = vector.load %arg6[%c0_14, %c0_15, %c0_16] : memref<1x8x128xf32, #tpu.memory_space<vmem>>, vector<1x8x128xf32>
      %16 = vector.shape_cast %15 : vector<1x8x128xf32> to vector<8x128xf32>
      %17 = vector.shape_cast %14 : vector<8x128xf32> to vector<1x8x128xf32>
      tpu.vector_store %arg6[%c0_14, %c0_15, %c0_16], %17 {strides = array<i32>} : memref<1x8x128xf32, #tpu.memory_space<vmem>>, vector<1x8x128xf32>,
    } else {
    }
    return
  }
  func.func @transform_0(%arg0: i32, %arg1: i32, %arg2: i32, %arg3: i32) -> (i32, i32, i32) {
    %c0_i32 = arith.constant 0 : i32
    return %arg0, %arg1, %arg3 : i32, i32, i32
  }
  func.func @transform_1(%arg0: i32, %arg1: i32, %arg2: i32, %arg3: i32) -> (i32, i32, i32) {
    %c0_i32 = arith.constant 0 : i32
    return %arg0, %arg3, %arg2 : i32, i32, i32
  }
  func.func @transform_2(%arg0: i32, %arg1: i32, %arg2: i32, %arg3: i32) -> (i32, i32, i32) {
    %c0_i32 = arith.constant 0 : i32
    return %arg0, %arg1, %arg2 : i32, i32, i32
  }
}

</mosaic_0001>

<llo_original>
// kernel: attention_dot.1
$region0: #{attention_dot.1}
  #allocation0 [shape = 'u32[]', space=smem, size = 0x4, offset = 0x4, fixed_abs, tag = 'smem constant byte address 0x4 - core index']
  #allocation1 [shape = 'u32[144,128]{1,0:T(1,128)}', space=vmem, size = 0x12000, scoped, tag = 'internal scratch']
  #allocation2 [shape = 'f32[8,128]{1,0:T(8,128)}', space=vmem, size = 0x1000, scoped, tag = 'scratch operand']
  %s0 = inlined_call_operand.vmem [shape: f32[2,8,128], index: 0, kind: input, shape index: {}]
  %s1 = inlined_call_operand.vmem [shape: f32[2,128,128], index: 1, kind: input, shape index: {}]
  %s2 = inlined_call_operand.hbm [shape: f32[2,8,128], index: 2, kind: output, shape index: {}]
  %s3 = sld [smem:[#allocation0]]
  $region49: #{attention_dot.1} parent=0
    _
  %s5 = ssub.s32 1, %s3
  %s6 = scalar_select 0, %s5, %s3
  $region1: #{attention_dot.1} parent=0
    #allocation3 [shape = 'u8[8192]{0}', space=vmem, size = 0x2000, scoped, tag = 'output window, operand 0']
    #allocation4 [shape = 's32[2]{0}', space=sflag, size = 0x8, scoped, tag = 'scoped memory for attention_dot.1']
    %7 = vsyncpa [#allocation4], 0
    %s8 = scalar_lea.sflag [#allocation4], 1
    %9 = vsyncpa %s8, 0
    loop: start=0, step=1, limit=4
    $region2: #{attention_dot.1} parent=1 // loop_pre_header
      _
    $region3: #{attention_dot.1} parent=1 // loop_header
      %s11 = sphi 0, %s15
      %p12 = scmp.ge.s32.totalorder %s11, 4
      %s18 = sphi 0, %s44
      %s19 = sphi 0, %s40
      %s20 = sphi 0, %s36
      %s21 = sphi 0, %s32
      %s22 = sphi 0, %s18
      %s23 = sphi 0, %s19
      %s24 = sphi 0, %s20
      %s25 = sphi 0, %s21
      %s26 = sphi 0, %s22
      %s27 = sphi 0, %s23
      %s28 = sphi 0, %s24
      %s29 = sphi 0, %s25
      %s51 = sphi 0, %s53
      %s54 = sphi 0, %s51
      %s55 = sphi 0, %s54
      %s71 = sphi 0, %s55
      %s81 = sphi 0, %s83
      %s84 = sphi 0, %s81
      %s85 = sphi 0, %s84
      %s101 = sphi 0, %s85
      %s111 = sphi 0, %s113
      %s114 = sphi 0, %s111
      %s115 = sphi 0, %s114
      %s131 = sphi 0, %s115
    $region4: #{attention_dot.1} parent=1 // loop_header_branch
      %14 = sbr.rel (%p12) target = $region8
    $region5: #{attention_dot.1} parent=1 // loop_body
      %s16 = ssub.s32 %s11, 1
      %s17 = ssub.s32 %s11, 2
      %s30 = sadd.s32 1, %s21
      %p31 = scmp.ge.s32.totalorder %s30, 1
      %s32 = scalar_select %p31, 0, %s30
      %s33 = sadd.s32 1, %s20
      %s34 = scalar_select %p31, %s33, %s20
      %p35 = scmp.ge.s32.totalorder %s34, 1
      %s36 = scalar_select %p35, 0, %s34
      %s37 = sadd.s32 1, %s19
      %s38 = scalar_select %p35, %s37, %s19
      %p39 = scmp.ge.s32.totalorder %s38, 1
      %s40 = scalar_select %p39, 0, %s38
      %s41 = sadd.s32 1, %s18
      %s42 = scalar_select %p39, %s41, %s18
      %p43 = scmp.ge.s32.totalorder %s42, 2
      %s44 = scalar_select %p43, 0, %s42
      %s45 = ssub.s32 %s18, %s44
      %s46 = ssub.s32 %s19, %s40
      %s47 = sor.u32 %s45, %s46
      %s48 = ssub.s32 %s21, %s32
      %s49 = sor.u32 %s47, %s48
      %p50 = scmp.eq.s32.totalorder %s49, 0
      %s52 = sadd.s32 %s51, 1
      %s53 = scalar_select %p50, %s51, %s52
      %p56 = pneg %p50
      %p57 = scmp.eq.s32.totalorder %s11, 1
      %p58 = por %p56, %p57
      %p59 = scmp.ne.s32.totalorder %s51, %s54
      %p60 = scmp.eq.s32.totalorder %s11, 0
      %p61 = por %p59, %p60
      %p62 = scmp.ne.s32.totalorder %s51, %s54
      %p63 = scmp.eq.s32.totalorder %s16, 1
      %p64 = por %p62, %p63
      %p65 = scmp.ne.s32.totalorder %s54, %s55
      %p66 = scmp.eq.s32.totalorder %s16, 0
      %p67 = por %p65, %p66
      %p68 = scmp.ne.s32.totalorder %s54, %s55
      %p69 = scmp.eq.s32.totalorder %s17, 1
      %p70 = por %p68, %p69
      %p72 = scmp.ne.s32.totalorder %s55, %s71
      %p73 = scmp.eq.s32.totalorder %s17, 0
      %p74 = por %p72, %p73
      %s75 = ssub.s32 %s18, %s44
      %s76 = ssub.s32 %s21, %s32
      %s77 = sor.u32 %s75, %s76
      %s78 = ssub.s32 %s20, %s36
      %s79 = sor.u32 %s77, %s78
      %p80 = scmp.eq.s32.totalorder %s79, 0
      %s82 = sadd.s32 %s81, 1
      %s83 = scalar_select %p80, %s81, %s82
      %p86 = pneg %p80
      %p87 = scmp.eq.s32.totalorder %s11, 1
      %p88 = por %p86, %p87
      %p89 = scmp.ne.s32.totalorder %s81, %s84
      %p90 = scmp.eq.s32.totalorder %s11, 0
      %p91 = por %p89, %p90
      %p92 = scmp.ne.s32.totalorder %s81, %s84
      %p93 = scmp.eq.s32.totalorder %s16, 1
      %p94 = por %p92, %p93
      %p95 = scmp.ne.s32.totalorder %s84, %s85
      %p96 = scmp.eq.s32.totalorder %s16, 0
      %p97 = por %p95, %p96
      %p98 = scmp.ne.s32.totalorder %s84, %s85
      %p99 = scmp.eq.s32.totalorder %s17, 1
      %p100 = por %p98, %p99
      %p102 = scmp.ne.s32.totalorder %s85, %s101
      %p103 = scmp.eq.s32.totalorder %s17, 0
      %p104 = por %p102, %p103
      %s105 = ssub.s32 %s18, %s44
      %s106 = ssub.s32 %s19, %s40
      %s107 = sor.u32 %s105, %s106
      %s108 = ssub.s32 %s20, %s36
      %s109 = sor.u32 %s107, %s108
      %p110 = scmp.eq.s32.totalorder %s109, 0
      %s112 = sadd.s32 %s111, 1
      %s113 = scalar_select %p110, %s111, %s112
      %p116 = pneg %p110
      %p117 = scmp.eq.s32.totalorder %s11, 1
      %p118 = por %p116, %p117
      %p119 = scmp.ne.s32.totalorder %s111, %s114
      %p120 = scmp.eq.s32.totalorder %s11, 0
      %p121 = por %p119, %p120
      %p122 = scmp.ne.s32.totalorder %s111, %s114
      %p123 = scmp.eq.s32.totalorder %s16, 1
      %p124 = por %p122, %p123
      %p125 = scmp.ne.s32.totalorder %s114, %s115
      %p126 = scmp.eq.s32.totalorder %s16, 0
      %p127 = por %p125, %p126
      %p128 = scmp.ne.s32.totalorder %s114, %s115
      %p129 = scmp.eq.s32.totalorder %s17, 1
      %p130 = por %p128, %p129
      %p132 = scmp.ne.s32.totalorder %s115, %s131
      %p133 = scmp.eq.s32.totalorder %s17, 0
      %p134 = por %p132, %p133
      %p135 = scmp.le.s32.totalorder 1, %s11
      %p136 = scmp.lt.s32.totalorder %s11, 3
      %p137 = pnand %p135, %p136
      %p138 = pneg %p137
      // Predicated region
      $region9: #{attention_dot.1} parent=5 // pred_check
        _
      $region10: #{attention_dot.1} parent=5 // pred_check_branch
        %140 = sbr.rel (%p137) target = $region12
      $region11: #{attention_dot.1} parent=5 // pred_region
        %s141 = ssub.s32 %s11, 1
      $region12: #{attention_dot.1} parent=5 // pred_fallthru
        _
      %p142 = scmp.lt.s32.totalorder %s11, 2
      // Predicated region
      $region13: #{attention_dot.1} parent=5 // pred_check
        %p143 = pneg %p142
      $region14: #{attention_dot.1} parent=5 // pred_check_branch
        %145 = sbr.rel (%p143) target = $region16
      $region15: #{attention_dot.1} parent=5 // pred_region
        // Predicated region
        $region17: #{attention_dot.1} parent=15 // pred_check
          %p146 = pneg %p61
        $region18: #{attention_dot.1} parent=15 // pred_check_branch
          %148 = sbr.rel (%p146) target = $region20
        $region19: #{attention_dot.1} parent=15 // pred_region
          %p149 = scmp.lt.s32.totalorder %s18, 1
          %s150 = scalar_select %p149, %s18, 1
          %p151 = scmp.lt.s32.totalorder %s19, 0
          %s152 = scalar_select %p151, %s19, 0
          %p153 = scmp.lt.s32.totalorder %s21, 0
          %s154 = scalar_select %p153, %s21, 0
          %s155 = sadd.s32 %s154, %s152
          %s156 = sadd.s32 %s155, %s150
          %s157 = smul.addr %s156, 8
          %s158 = scalar_lea.vmem %s0, %s157
        $region20: #{attention_dot.1} parent=15 // pred_fallthru
          _
        // Predicated region
        $region21: #{attention_dot.1} parent=15 // pred_check
          %p159 = pneg %p91
        $region22: #{attention_dot.1} parent=15 // pred_check_branch
          %161 = sbr.rel (%p159) target = $region24
        $region23: #{attention_dot.1} parent=15 // pred_region
          %s162 = smul.u32 16, %s21
          %p163 = scmp.lt.s32.totalorder %s18, 1
          %s164 = scalar_select %p163, %s18, 1
          %p165 = scmp.lt.s32.totalorder %s162, 15
          %s166 = scalar_select %p165, %s162, 15
          %p167 = scmp.lt.s32.totalorder %s20, 0
          %s168 = scalar_select %p167, %s20, 0
          %s169 = sadd.s32 %s168, %s166
          %s170 = smul.addr %s164, 16
          %s171 = sadd.s32 %s169, %s170
          %s172 = smul.addr %s171, 8
          %s173 = scalar_lea.vmem %s1, %s172
          %s174 = smul.u32 16, %s21
        $region24: #{attention_dot.1} parent=15 // pred_fallthru
          _
      $region16: #{attention_dot.1} parent=5 // pred_fallthru
        _
      %p175 = scmp.le.s32.totalorder 1, %s11
      %p176 = scmp.lt.s32.totalorder %s11, 3
      %p177 = pnand %p175, %p176
      %p178 = pneg %p177
      // Predicated region
      $region25: #{attention_dot.1} parent=5 // pred_check
        _
      $region26: #{attention_dot.1} parent=5 // pred_check_branch
        %180 = sbr.rel (%p177) target = $region28
      $region27: #{attention_dot.1} parent=5 // pred_region
        %s181 = ssub.s32 %s11, 1
        %p182 = scmp.lt.s32.totalorder %s22, 1
        %s183 = scalar_select %p182, %s22, 1
        %p184 = scmp.lt.s32.totalorder %s23, 0
        %s185 = scalar_select %p184, %s23, 0
        %p186 = scmp.lt.s32.totalorder %s25, 0
        %s187 = scalar_select %p186, %s25, 0
        %s188 = sadd.s32 %s187, %s185
        %s189 = sadd.s32 %s188, %s183
        %s190 = smul.addr %s189, 8
        %s191 = scalar_lea.vmem %s0, %s190
        %p192 = pneg %p67
        %p193 = pneg %p64
        %s194 = smul.u32 16, %s25
        %p195 = scmp.lt.s32.totalorder %s22, 1
        %s196 = scalar_select %p195, %s22, 1
        %p197 = scmp.lt.s32.totalorder %s194, 15
        %s198 = scalar_select %p197, %s194, 15
        %p199 = scmp.lt.s32.totalorder %s24, 0
        %s200 = scalar_select %p199, %s24, 0
        %s201 = sadd.s32 %s200, %s198
        %s202 = smul.addr %s196, 16
        %s203 = sadd.s32 %s201, %s202
        %s204 = smul.addr %s203, 8
        %s205 = scalar_lea.vmem %s1, %s204
        %p206 = pneg %p97
        %p207 = pneg %p94
        %p208 = pneg %p127
        %p209 = pneg %p124
        %s210 = sand.u32 %s114, 1
        %s211 = scalar_lea.sflag [#allocation4], %s210
        %s212 = sand.u32 %s114, 1
        %s213 = smul.addr %s212, 8
        %s214 = scalar_lea.vmem [#allocation3], %s213
        %p215 = scmp.lt.s32.totalorder %s22, 1
        %s216 = scalar_select %p215, %s22, 1
        %p217 = scmp.lt.s32.totalorder %s23, 0
        %s218 = scalar_select %p217, %s23, 0
        %p219 = scmp.lt.s32.totalorder %s25, 0
        %s220 = scalar_select %p219, %s25, 0
        %s221 = sadd.s32 %s220, %s218
        %s222 = sadd.s32 %s221, %s216
        %s223 = smul.addr %s222, 8
        %s224 = scalar_lea.vmem %s0, %s223
        %s225 = smul.u32 16, %s25
        %p226 = scmp.lt.s32.totalorder %s22, 1
        %s227 = scalar_select %p226, %s22, 1
        %p228 = scmp.lt.s32.totalorder %s225, 15
        %s229 = scalar_select %p228, %s225, 15
        %p230 = scmp.lt.s32.totalorder %s24, 0
        %s231 = scalar_select %p230, %s24, 0
        %s232 = sadd.s32 %s231, %s229
        %s233 = smul.addr %s227, 16
        %s234 = sadd.s32 %s232, %s233
        %s235 = smul.addr %s234, 8
        %s236 = scalar_lea.vmem %s1, %s235
        %s237 = smul.u32 16, %s25
        %p238 = scmp.eq.s32.totalorder %s25, 0
        // Predicated region
        $region29: #{attention_dot.1} parent=27 // pred_check
          %p239 = pneg %p238
        $region30: #{attention_dot.1} parent=27 // pred_check_branch
          %241 = sbr.rel (%p239) target = $region32
        $region31: #{attention_dot.1} parent=27 // pred_region
          %242 = vst [vmem:[#allocation2] sm:$0xff] 0.0
        $region32: #{attention_dot.1} parent=27 // pred_fallthru
          _
        %v243 = vld [vmem:[#allocation2] sm:$0xff]
        %v244 = vld [vmem:[%s224] sm:$0xff]
        %v245 = vld [vmem:[%s236] sm:$0xff]
        %v246 = vld [vmem:[%s236 + $0x8] sm:$0xff]
        %v247 = vld [vmem:[%s236 + $0x10] sm:$0xff]
        %v248 = vld [vmem:[%s236 + $0x18] sm:$0xff]
        %v249 = vld [vmem:[%s236 + $0x20] sm:$0xff]
        %v250 = vld [vmem:[%s236 + $0x28] sm:$0xff]
        %v251 = vld [vmem:[%s236 + $0x30] sm:$0xff]
        %v252 = vld [vmem:[%s236 + $0x38] sm:$0xff]
        %v253 = vld [vmem:[%s236 + $0x40] sm:$0xff]
        %v254 = vld [vmem:[%s236 + $0x48] sm:$0xff]
        %v255 = vld [vmem:[%s236 + $0x50] sm:$0xff]
        %v256 = vld [vmem:[%s236 + $0x58] sm:$0xff]
        %v257 = vld [vmem:[%s236 + $0x60] sm:$0xff]
        %v258 = vld [vmem:[%s236 + $0x68] sm:$0xff]
        %v259 = vld [vmem:[%s236 + $0x70] sm:$0xff]
        %v260 = vld [vmem:[%s236 + $0x78] sm:$0xff]
        %261 = vmatprep.subr.mxu0 0.0
        %262 = vmatpush1.msra.mxu0 %v245
        %263 = vmatprep.subr.mxu0 0.0
        %264 = vmatpush1.msra.mxu0 %v246
        %265 = vmatprep.subr.mxu0 0.0
        %266 = vmatpush1.msra.mxu0 %v247
        %267 = vmatprep.subr.mxu0 0.0
        %268 = vmatpush1.msra.mxu0 %v248
        %269 = vmatprep.subr.mxu0 0.0
        %270 = vmatpush1.msra.mxu0 %v249
        %271 = vmatprep.subr.mxu0 0.0
        %272 = vmatpush1.msra.mxu0 %v250
        %273 = vmatprep.subr.mxu0 0.0
        %274 = vmatpush1.msra.mxu0 %v251
        %275 = vmatprep.subr.mxu0 0.0
        %276 = vmatpush1.msra.mxu0 %v252
        %277 = vmatprep.subr.mxu0 0.0
        %278 = vmatpush1.msra.mxu0 %v253
        %279 = vmatprep.subr.mxu0 0.0
        %280 = vmatpush1.msra.mxu0 %v254
        %281 = vmatprep.subr.mxu0 0.0
        %282 = vmatpush1.msra.mxu0 %v255
        %283 = vmatprep.subr.mxu0 0.0
        %284 = vmatpush1.msra.mxu0 %v256
        %285 = vmatprep.subr.mxu0 0.0
        %286 = vmatpush1.msra.mxu0 %v257
        %287 = vmatprep.subr.mxu0 0.0
        %288 = vmatpush1.msra.mxu0 %v258
        %289 = vmatprep.subr.mxu0 0.0
        %290 = vmatpush1.msra.mxu0 %v259
        %291 = vmatprep.subr.mxu0 0.0
        %292 = vmatpush1.msra.mxu0 %v260
        %293 = vmatprep.subr.mxu0 0.0
        %294 = vmatpush1.msra.mxu0 0.0
        %295 = vmatprep.subr.mxu0 0.0
        %296 = vmatpush1.msra.mxu0 0.0
        %297 = vmatprep.subr.mxu0 0.0
        %298 = vmatpush1.msra.mxu0 0.0
        %299 = vmatprep.subr.mxu0 0.0
        %300 = vmatpush1.msra.mxu0 0.0
        %301 = vmatprep.subr.mxu0 0.0
        %302 = vmatpush1.msra.mxu0 0.0
        %303 = vmatprep.subr.mxu0 0.0
        %304 = vmatpush1.msra.mxu0 0.0
        %305 = vmatprep.subr.mxu0 0.0
        %306 = vmatpush1.msra.mxu0 0.0
        %307 = vmatprep.subr.mxu0 0.0
        %308 = vmatpush1.msra.mxu0 0.0
        %309 = vmatprep.subr.mxu0 0.0
        %310 = vmatpush1.msra.mxu0 0.0
        %311 = vmatprep.subr.mxu0 0.0
        %312 = vmatpush1.msra.mxu0 0.0
        %313 = vmatprep.subr.mxu0 0.0
        %314 = vmatpush1.msra.mxu0 0.0
        %315 = vmatprep.subr.mxu0 0.0
        %316 = vmatpush1.msra.mxu0 0.0
        %317 = vmatprep.subr.mxu0 0.0
        %318 = vmatpush1.msra.mxu0 0.0
        %319 = vmatprep.subr.mxu0 0.0
        %320 = vmatpush1.msra.mxu0 0.0
        %321 = vmatprep.subr.mxu0 0.0
        %322 = vmatpush1.msra.mxu0 0.0
        %323 = vmatprep.subr.mxu0 0.0
        %324 = vmatpush1.msra.mxu0 0.0
        %325 = vmatprep.mubr.f32.mxu0 0.0
        %326 = vmatmul.mubr.f32.gmra.mrb[0].mxu0 %v244
        %v327 = vpop.f32.mrb[0].mxu0
        %v328 = vadd.f32 0.0, %v327
        %v329 = vpop.f32.mrb[0].mxu0
        %330 = vdwg.mxu0
        %v331 = vadd.f32 %v243, %v328
        %332 = vst [vmem:[#allocation2] sm:$0xff] %v331
        // Predicated region
        $region33: #{attention_dot.1} parent=27 // pred_check
          %p333 = pneg %p238
        $region34: #{attention_dot.1} parent=27 // pred_check_branch
          %335 = sbr.rel (%p333) target = $region36
        $region35: #{attention_dot.1} parent=27 // pred_region
          %v336 = vld [vmem:[#allocation2] sm:$0xff]
          %337 = vst [vmem:[%s214] sm:$0xff] %v336
        $region36: #{attention_dot.1} parent=27 // pred_fallthru
          _
        %s338 = sand.u32 %s114, 1
        %s339 = scalar_lea.sflag [#allocation4], %s338
        %s340 = sand.u32 %s114, 1
        %s341 = smul.addr %s340, 8
        %s342 = scalar_lea.vmem [#allocation3], %s341
        // Predicated region
        $region37: #{attention_dot.1} parent=27 // pred_check
          %p343 = pneg %p124
        $region38: #{attention_dot.1} parent=27 // pred_check_branch
          %345 = sbr.rel (%p343) target = $region40
        $region39: #{attention_dot.1} parent=27 // pred_region
          %s347 = ssub.s32 128, 128
          %348 = vsyncadd %s339, %s347
          %s349 = sadd.s32 %s24, %s23
          %s350 = sadd.s32 %s349, %s22
          %s351 = smul.addr %s350, 128
          %s352 = scalar_lea.hbm %s2, %s351
          %s354 = sshll.u32 %s342, 4
          %s355 = int_to_ptr.vmem [resolvable:$true] %s354
          %357 = dma.vmem_to_hbm [thread:$0]  %s355, 128, %s352, %s339
        $region40: #{attention_dot.1} parent=27 // pred_fallthru
          _
      $region28: #{attention_dot.1} parent=5 // pred_fallthru
        _
      %p358 = scmp.le.s32.totalorder 2, %s11
      // Predicated region
      $region41: #{attention_dot.1} parent=5 // pred_check
        %p359 = pneg %p358
      $region42: #{attention_dot.1} parent=5 // pred_check_branch
        %361 = sbr.rel (%p359) target = $region44
      $region43: #{attention_dot.1} parent=5 // pred_region
        %s362 = ssub.s32 %s11, 2
        // Predicated region
        $region45: #{attention_dot.1} parent=43 // pred_check
          %p363 = pneg %p130
        $region46: #{attention_dot.1} parent=43 // pred_check_branch
          %365 = sbr.rel (%p363) target = $region48
        $region47: #{attention_dot.1} parent=43 // pred_region
          %s366 = sand.u32 %s115, 1
          %s367 = scalar_lea.sflag [#allocation4], %s366
          %s368 = sand.u32 %s115, 1
          %s369 = smul.addr %s368, 8
          %s370 = scalar_lea.vmem [#allocation3], %s369
          %371 = dma.done %s367, 128
        $region48: #{attention_dot.1} parent=43 // pred_fallthru
          _
      $region44: #{attention_dot.1} parent=5 // pred_fallthru
        _
    $region6: #{attention_dot.1} parent=1 // loop_footer
      %s15 = sadd.s32 1, %s11
    $region7: #{attention_dot.1} parent=1 // loop_footer_branch
      %10 = sbr.rel target = $region3
    $region8: #{attention_dot.1} parent=1 // loop_exit
      _
    %372 = vsyncpa [#allocation4], 1
    %s373 = scalar_lea.sflag [#allocation4], 1
    %374 = vsyncpa %s373, 1

</llo_original>
